<compile_context>
chip_gen: v6e
topology: v6e:2x2x1
jax: 0.10.0
libtpu: 0.0.40
codegen_flags: <defaults>
</compile_context>

<pallas_src>
import functools

import jax
import jax.numpy as jnp
from jax import lax
from jax.experimental import pallas as pl
from jax.experimental.pallas import tpu as pltpu


def _dist_stripe(tile, full, row_mask):
    """One (tile_q, n) stripe of the pairwise Euclidean distance matrix."""
    tf = tile.astype(jnp.float32)
    ff = full.astype(jnp.float32)
    # Squared norms of the stripe rows, (tile_q, 1).
    r_tile = jnp.sum(tf * tf, axis=1, keepdims=True)
    # Squared norms of all rows oriented as a (1, n) row vector, produced with a
    # tiny MXU matmul (avoids a cross-lane transpose of an (n, 1) reduction).
    ones = jnp.ones((1, ff.shape[1]), jnp.float32)
    r_all = lax.dot_general(ones, ff * ff, (((1,), (1,)), ((), ())),
                            preferred_element_type=jnp.float32)       # (1, n)
    # Gram-matrix stripe on the MXU; inputs stay in their native dtype,
    # accumulation is f32.
    g = lax.dot_general(tile, full, (((1,), (1,)), ((), ())),
                        preferred_element_type=jnp.float32)           # (tile_q, n)
    d2 = r_tile + r_all - 2.0 * g
    d = jnp.sqrt(jnp.maximum(d2, 0.0))       # clamp tiny fp negatives (diagonal)
    return jnp.where(row_mask, d, 0.0)       # zero out padded rows of last stripe


def _dcor_kernel(x_tile_ref, y_tile_ref, x_all_ref, y_all_ref,
                 o_ref, acc_ref, *, n, tile_q):
    i = pl.program_id(0)

    @pl.when(i == 0)
    def _init():
        for k in range(8):
            acc_ref[k] = jnp.float32(0.0)

    row_ids = i * tile_q + lax.broadcasted_iota(jnp.int32, (tile_q, 1), 0)
    row_mask = row_ids < n

    a_s = _dist_stripe(x_tile_ref[...], x_all_ref[...], row_mask)   # (tile_q, n)
    b_s = _dist_stripe(y_tile_ref[...], y_all_ref[...], row_mask)   # (tile_q, n)

    # Complete row sums (every stripe holds all n columns of its rows).
    ra = jnp.sum(a_s, axis=1, keepdims=True)                        # (tile_q, 1)
    rb = jnp.sum(b_s, axis=1, keepdims=True)

    acc_ref[0] += jnp.sum(a_s * b_s)
    acc_ref[1] += jnp.sum(a_s * a_s)
    acc_ref[2] += jnp.sum(b_s * b_s)
    acc_ref[3] += jnp.sum(ra * rb)
    acc_ref[4] += jnp.sum(ra * ra)
    acc_ref[5] += jnp.sum(rb * rb)
    acc_ref[6] += jnp.sum(ra)
    acc_ref[7] += jnp.sum(rb)

    @pl.when(i == pl.num_programs(0) - 1)
    def _finalize():
        inv_n2 = 1.0 / float(n * n)
        inv_n3 = 1.0 / float(n * n * n)
        mean_a = acc_ref[6] * inv_n2
        mean_b = acc_ref[7] * inv_n2
        # sum(A*B)/n^2 = sum(a*b)/n^2 - 2*sum_i(rowsum_a_i*rowsum_b_i)/n^3
        #                + mean(a)*mean(b)       (a, b symmetric)
        dcov2_xy = acc_ref[0] * inv_n2 - 2.0 * acc_ref[3] * inv_n3 + mean_a * mean_b
        dcov2_xx = acc_ref[1] * inv_n2 - 2.0 * acc_ref[4] * inv_n3 + mean_a * mean_a
        dcov2_yy = acc_ref[2] * inv_n2 - 2.0 * acc_ref[5] * inv_n3 + mean_b * mean_b
        dcov2_xy = jnp.maximum(dcov2_xy, 0.0)
        xxyy = jnp.maximum(dcov2_xx * dcov2_yy, 0.0)
        # -sqrt(xy) / sqrt(sqrt(xx) * sqrt(yy)) == -sqrt(xy) / (xx*yy)**0.25
        # (scalar epilogue runs once, on the last grid step only).
        o_ref[0, 0] = -jnp.sqrt(dcov2_xy) / jnp.sqrt(jnp.sqrt(xxyy))


def dcor_loss(x, y, *, tile_q=128):
    """Pallas equivalent of DcorLoss().forward(x, y); returns a scalar."""
    n, dx = x.shape
    n_y, dy = y.shape
    assert n == n_y, "x and y must have the same batch size"

    tile_q = max(1, min(tile_q, n))
    if tile_q < n and tile_q % 8 != 0:      # keep the stripe sublane dim 8-aligned
        tile_q = max(8, (tile_q // 8) * 8)
    num_stripes = pl.cdiv(n, tile_q)

    kernel = functools.partial(_dcor_kernel, n=n, tile_q=tile_q)

    bytes_in = x.size * x.dtype.itemsize + y.size * y.dtype.itemsize
    cost = pl.CostEstimate(
        flops=2 * n * n * (dx + dy) + 12 * n * n,
        transcendentals=2 * n * n,
        bytes_accessed=2 * bytes_in + 4,
    )

    out = pl.pallas_call(
        kernel,
        out_shape=jax.ShapeDtypeStruct((1, 1), jnp.float32),
        grid=(num_stripes,),
        in_specs=[
            pl.BlockSpec((tile_q, dx), lambda i: (i, 0)),   # x row-stripe
            pl.BlockSpec((tile_q, dy), lambda i: (i, 0)),   # y row-stripe
            pl.BlockSpec((n, dx), lambda i: (0, 0)),        # x, VMEM-resident
            pl.BlockSpec((n, dy), lambda i: (0, 0)),        # y, VMEM-resident
        ],
        out_specs=pl.BlockSpec(memory_space=pltpu.MemorySpace.SMEM),
        scratch_shapes=[pltpu.SMEM((8,), jnp.float32)],
        compiler_params=pltpu.CompilerParams(
            dimension_semantics=("arbitrary",),   # stripe axis is a reduction axis
            vmem_limit_bytes=32 * 1024 * 1024,
        ),
        cost_estimate=cost,
    )(x, y, x, y)
    return out[0, 0]


def _dcor_loss_ref(x, y):
    """Pure-JAX reference mirroring the PyTorch forward."""
    x = x.astype(jnp.float32)
    y = y.astype(jnp.float32)
    a = jnp.sqrt(jnp.sum((x[:, None, :] - x[None, :, :]) ** 2, axis=-1))
    b = jnp.sqrt(jnp.sum((y[:, None, :] - y[None, :, :]) ** 2, axis=-1))
    A = a - a.mean(axis=0)[None, :] - a.mean(axis=1)[:, None] + a.mean()
    B = b - b.mean(axis=0)[None, :] - b.mean(axis=1)[:, None] + b.mean()
    n = x.shape[0]
    dcov2_xy = (A * B).sum() / float(n * n)
    dcov2_xx = (A * A).sum() / float(n * n)
    dcov2_yy = (B * B).sum() / float(n * n)
    return -jnp.sqrt(dcov2_xy) / jnp.sqrt(jnp.sqrt(dcov2_xx) * jnp.sqrt(dcov2_yy))


if __name__ == "__main__":
    key = jax.random.PRNGKey(0)
    kx, ky = jax.random.split(key)

    # DcorLoss has no parameters; it takes two batches of feature vectors.
    n, dx, dy = 8, 32, 16
    x = jax.random.normal(kx, (n, dx), dtype=jnp.float32)
    y = jax.random.normal(ky, (n, dy), dtype=jnp.float32)

    out = jax.block_until_ready(dcor_loss(x, y))
    ref = _dcor_loss_ref(x, y)
    assert jnp.isfinite(out), "kernel produced non-finite output"
    assert jnp.allclose(out, ref, rtol=2e-3, atol=1e-4), (out, ref)

    # Exercise the multi-stripe grid path (batch not a multiple of the stripe
    # size -> masked last stripe).
    n2 = 20
    x2 = jax.random.normal(jax.random.PRNGKey(1), (n2, dx), dtype=jnp.float32)
    y2 = jax.random.normal(jax.random.PRNGKey(2), (n2, dy), dtype=jnp.float32)
    out2 = jax.block_until_ready(dcor_loss(x2, y2, tile_q=8))
    ref2 = _dcor_loss_ref(x2, y2)
    assert jnp.isfinite(out2), "kernel produced non-finite output (tiled path)"
    assert jnp.allclose(out2, ref2, rtol=2e-3, atol=1e-4), (out2, ref2)

    print("KERNEL_OK")
</pallas_src>

<mosaic_0001>
module attributes {stable_mosaic.version = 11 : i64} {
  func.func @_dcor_kernel(%arg0: i32, %arg1: memref<8x32xf32, #tpu.memory_space<vmem>>, %arg2: memref<8x16xf32, #tpu.memory_space<vmem>>, %arg3: memref<8x32xf32, #tpu.memory_space<vmem>>, %arg4: memref<8x16xf32, #tpu.memory_space<vmem>>, %arg5: memref<1x1xf32, #tpu.memory_space<smem>>, %arg6: memref<8xf32, #tpu.memory_space<smem>>) attributes {dimension_semantics = [#tpu.dimension_semantics<arbitrary>], iteration_bounds = array<i64: 1>, scalar_prefetch = 0 : i64, scratch_operands = 1 : i64, tpu.core_type = #tpu.core_type<tc>, window_params = [{transform_indices = @transform_0, window_bounds = array<i64: 8, 32>}, {transform_indices = @transform_1, window_bounds = array<i64: 8, 16>}, {pipeline_mode = #tpu.pipeline_mode<synchronous>, transform_indices = @transform_2, window_bounds = array<i64: 8, 32>}, {pipeline_mode = #tpu.pipeline_mode<synchronous>, transform_indices = @transform_3, window_bounds = array<i64: 8, 16>}, {transform_indices = @transform_4, window_bounds = array<i64: 1, 1>}]} {
    %c0_i32 = arith.constant 0 : i32
    %0 = arith.cmpi eq, %arg0, %c0_i32 : i32
    %1 = arith.extui %0 : i1 to i32
    %c0_i32_0 = arith.constant 0 : i32
    %2 = arith.cmpi ne, %1, %c0_i32_0 : i32
    scf.if %2 {
      %cst_43 = arith.constant 0.000000e+00 : f32
      %c0_44 = arith.constant 0 : index
      %122 = memref.load %arg6[%c0_44] : memref<8xf32, #tpu.memory_space<smem>>
      memref.store %cst_43, %arg6[%c0_44] : memref<8xf32, #tpu.memory_space<smem>>
      %cst_45 = arith.constant 0.000000e+00 : f32
      %c1_46 = arith.constant 1 : index
      %123 = memref.load %arg6[%c1_46] : memref<8xf32, #tpu.memory_space<smem>>
      memref.store %cst_45, %arg6[%c1_46] : memref<8xf32, #tpu.memory_space<smem>>
      %cst_47 = arith.constant 0.000000e+00 : f32
      %c2_48 = arith.constant 2 : index
      %124 = memref.load %arg6[%c2_48] : memref<8xf32, #tpu.memory_space<smem>>
      memref.store %cst_47, %arg6[%c2_48] : memref<8xf32, #tpu.memory_space<smem>>
      %cst_49 = arith.constant 0.000000e+00 : f32
      %c3_50 = arith.constant 3 : index
      %125 = memref.load %arg6[%c3_50] : memref<8xf32, #tpu.memory_space<smem>>
      memref.store %cst_49, %arg6[%c3_50] : memref<8xf32, #tpu.memory_space<smem>>
      %cst_51 = arith.constant 0.000000e+00 : f32
      %c4_52 = arith.constant 4 : index
      %126 = memref.load %arg6[%c4_52] : memref<8xf32, #tpu.memory_space<smem>>
      memref.store %cst_51, %arg6[%c4_52] : memref<8xf32, #tpu.memory_space<smem>>
      %cst_53 = arith.constant 0.000000e+00 : f32
      %c5_54 = arith.constant 5 : index
      %127 = memref.load %arg6[%c5_54] : memref<8xf32, #tpu.memory_space<smem>>
      memref.store %cst_53, %arg6[%c5_54] : memref<8xf32, #tpu.memory_space<smem>>
      %cst_55 = arith.constant 0.000000e+00 : f32
      %c6_56 = arith.constant 6 : index
      %128 = memref.load %arg6[%c6_56] : memref<8xf32, #tpu.memory_space<smem>>
      memref.store %cst_55, %arg6[%c6_56] : memref<8xf32, #tpu.memory_space<smem>>
      %cst_57 = arith.constant 0.000000e+00 : f32
      %c7_58 = arith.constant 7 : index
      %129 = memref.load %arg6[%c7_58] : memref<8xf32, #tpu.memory_space<smem>>
      memref.store %cst_57, %arg6[%c7_58] : memref<8xf32, #tpu.memory_space<smem>>
    } else {
    }
    %c8_i32 = arith.constant 8 : i32
    %3 = arith.muli %arg0, %c8_i32 : i32
    %4 = tpu.iota {dimensions = array<i32: 0>} : vector<8x1xi32>
    %5 = vector.broadcast %3 : i32 to vector<8x1xi32>
    %6 = arith.addi %5, %4 : vector<8x1xi32>
    %c8_i32_1 = arith.constant 8 : i32
    %7 = vector.broadcast %c8_i32_1 : i32 to vector<8x1xi32>
    %8 = arith.cmpi slt, %6, %7 : vector<8x1xi32>
    %c0 = arith.constant 0 : index
    %c0_2 = arith.constant 0 : index
    %9 = vector.load %arg1[%c0, %c0_2] : memref<8x32xf32, #tpu.memory_space<vmem>>, vector<8x32xf32>
    %c0_3 = arith.constant 0 : index
    %c0_4 = arith.constant 0 : index
    %10 = vector.load %arg3[%c0_3, %c0_4] : memref<8x32xf32, #tpu.memory_space<vmem>>, vector<8x32xf32>
    %11 = arith.mulf %9, %9 : vector<8x32xf32>
    %cst = arith.constant dense<0.000000e+00> : vector<8xf32>
    %12 = vector.multi_reduction <add>, %11, %cst [1] : vector<8x32xf32> to vector<8xf32>
    %13 = vector.shape_cast %12 : vector<8xf32> to vector<8x1xf32>
    %cst_5 = arith.constant 1.000000e+00 : f32
    %14 = vector.broadcast %cst_5 : f32 to vector<1x32xf32>
    %15 = arith.mulf %10, %10 : vector<8x32xf32>
    %cst_6 = arith.constant dense<0.000000e+00> : vector<1x8xf32>
    %16 = tpu.matmul %14, %15, %cst_6 {dimension_numbers = #tpu.dot_dimension_numbers<[1], [1], [0], [0], [0, 0, 1, 0], [], []>} : vector<1x32xf32>, vector<8x32xf32>, vector<1x8xf32> -> vector<1x8xf32>
    %cst_7 = arith.constant dense<0.000000e+00> : vector<8x8xf32>
    %17 = tpu.matmul %9, %10, %cst_7 {dimension_numbers = #tpu.dot_dimension_numbers<[1], [1], [0], [0], [0, 0, 1, 0], [], []>} : vector<8x32xf32>, vector<8x32xf32>, vector<8x8xf32> -> vector<8x8xf32>
    %18 = vector.broadcast %13 : vector<8x1xf32> to vector<8x8xf32>
    %19 = vector.broadcast %16 : vector<1x8xf32> to vector<8x8xf32>
    %20 = arith.addf %18, %19 : vector<8x8xf32>
    %cst_8 = arith.constant 2.000000e+00 : f32
    %21 = vector.broadcast %cst_8 : f32 to vector<8x8xf32>
    %22 = arith.mulf %21, %17 : vector<8x8xf32>
    %23 = arith.subf %20, %22 : vector<8x8xf32>
    %cst_9 = arith.constant 0.000000e+00 : f32
    %24 = vector.broadcast %cst_9 : f32 to vector<8x8xf32>
    %25 = arith.maximumf %23, %24 : vector<8x8xf32>
    %26 = math.sqrt %25 : vector<8x8xf32>
    %cst_10 = arith.constant 0.000000e+00 : f32
    %27 = vector.shape_cast %8 : vector<8x1xi1> to vector<8x1xi1>
    %28 = vector.broadcast %27 : vector<8x1xi1> to vector<8x8xi1>
    %29 = vector.broadcast %cst_10 : f32 to vector<8x8xf32>
    %30 = arith.select %28, %26, %29 : vector<8x8xi1>, vector<8x8xf32>
    %c0_11 = arith.constant 0 : index
    %c0_12 = arith.constant 0 : index
    %31 = vector.load %arg2[%c0_11, %c0_12] : memref<8x16xf32, #tpu.memory_space<vmem>>, vector<8x16xf32>
    %c0_13 = arith.constant 0 : index
    %c0_14 = arith.constant 0 : index
    %32 = vector.load %arg4[%c0_13, %c0_14] : memref<8x16xf32, #tpu.memory_space<vmem>>, vector<8x16xf32>
    %33 = arith.mulf %31, %31 : vector<8x16xf32>
    %cst_15 = arith.constant dense<0.000000e+00> : vector<8xf32>
    %34 = vector.multi_reduction <add>, %33, %cst_15 [1] : vector<8x16xf32> to vector<8xf32>
    %35 = vector.shape_cast %34 : vector<8xf32> to vector<8x1xf32>
    %cst_16 = arith.constant 1.000000e+00 : f32
    %36 = vector.broadcast %cst_16 : f32 to vector<1x16xf32>
    %37 = arith.mulf %32, %32 : vector<8x16xf32>
    %cst_17 = arith.constant dense<0.000000e+00> : vector<1x8xf32>
    %38 = tpu.matmul %36, %37, %cst_17 {dimension_numbers = #tpu.dot_dimension_numbers<[1], [1], [0], [0], [0, 0, 1, 0], [], []>} : vector<1x16xf32>, vector<8x16xf32>, vector<1x8xf32> -> vector<1x8xf32>
    %cst_18 = arith.constant dense<0.000000e+00> : vector<8x8xf32>
    %39 = tpu.matmul %31, %32, %cst_18 {dimension_numbers = #tpu.dot_dimension_numbers<[1], [1], [0], [0], [0, 0, 1, 0], [], []>} : vector<8x16xf32>, vector<8x16xf32>, vector<8x8xf32> -> vector<8x8xf32>
    %40 = vector.broadcast %35 : vector<8x1xf32> to vector<8x8xf32>
    %41 = vector.broadcast %38 : vector<1x8xf32> to vector<8x8xf32>
    %42 = arith.addf %40, %41 : vector<8x8xf32>
    %cst_19 = arith.constant 2.000000e+00 : f32
    %43 = vector.broadcast %cst_19 : f32 to vector<8x8xf32>
    %44 = arith.mulf %43, %39 : vector<8x8xf32>
    %45 = arith.subf %42, %44 : vector<8x8xf32>
    %cst_20 = arith.constant 0.000000e+00 : f32
    %46 = vector.broadcast %cst_20 : f32 to vector<8x8xf32>
    %47 = arith.maximumf %45, %46 : vector<8x8xf32>
    %48 = math.sqrt %47 : vector<8x8xf32>
    %cst_21 = arith.constant 0.000000e+00 : f32
    %49 = vector.shape_cast %8 : vector<8x1xi1> to vector<8x1xi1>
    %50 = vector.broadcast %49 : vector<8x1xi1> to vector<8x8xi1>
    %51 = vector.broadcast %cst_21 : f32 to vector<8x8xf32>
    %52 = arith.select %50, %48, %51 : vector<8x8xi1>, vector<8x8xf32>
    %cst_22 = arith.constant dense<0.000000e+00> : vector<8xf32>
    %53 = vector.multi_reduction <add>, %30, %cst_22 [1] : vector<8x8xf32> to vector<8xf32>
    %54 = vector.shape_cast %53 : vector<8xf32> to vector<8x1xf32>
    %cst_23 = arith.constant dense<0.000000e+00> : vector<8xf32>
    %55 = vector.multi_reduction <add>, %52, %cst_23 [1] : vector<8x8xf32> to vector<8xf32>
    %56 = vector.shape_cast %55 : vector<8xf32> to vector<8x1xf32>
    %c0_24 = arith.constant 0 : index
    %57 = memref.load %arg6[%c0_24] : memref<8xf32, #tpu.memory_space<smem>>
    %58 = arith.mulf %30, %52 : vector<8x8xf32>
    %59 = vector.shape_cast %58 : vector<8x8xf32> to vector<1x8x8xf32>
    %cst_25 = arith.constant dense<0.000000e+00> : vector<1xf32>
    %60 = vector.multi_reduction <add>, %59, %cst_25 [1, 2] : vector<1x8x8xf32> to vector<1xf32>
    %61 = vector.shape_cast %60 : vector<1xf32> to vector<1x1x1xf32>
    %62 = vector.extract %61[0, 0, 0] : f32 from vector<1x1x1xf32>
    %63 = arith.addf %57, %62 : f32
    %c0_26 = arith.constant 0 : index
    %64 = memref.load %arg6[%c0_26] : memref<8xf32, #tpu.memory_space<smem>>
    memref.store %63, %arg6[%c0_26] : memref<8xf32, #tpu.memory_space<smem>>
    %c1 = arith.constant 1 : index
    %65 = memref.load %arg6[%c1] : memref<8xf32, #tpu.memory_space<smem>>
    %66 = arith.mulf %30, %30 : vector<8x8xf32>
    %67 = vector.shape_cast %66 : vector<8x8xf32> to vector<1x8x8xf32>
    %cst_27 = arith.constant dense<0.000000e+00> : vector<1xf32>
    %68 = vector.multi_reduction <add>, %67, %cst_27 [1, 2] : vector<1x8x8xf32> to vector<1xf32>
    %69 = vector.shape_cast %68 : vector<1xf32> to vector<1x1x1xf32>
    %70 = vector.extract %69[0, 0, 0] : f32 from vector<1x1x1xf32>
    %71 = arith.addf %65, %70 : f32
    %c1_28 = arith.constant 1 : index
    %72 = memref.load %arg6[%c1_28] : memref<8xf32, #tpu.memory_space<smem>>
    memref.store %71, %arg6[%c1_28] : memref<8xf32, #tpu.memory_space<smem>>
    %c2 = arith.constant 2 : index
    %73 = memref.load %arg6[%c2] : memref<8xf32, #tpu.memory_space<smem>>
    %74 = arith.mulf %52, %52 : vector<8x8xf32>
    %75 = vector.shape_cast %74 : vector<8x8xf32> to vector<1x8x8xf32>
    %cst_29 = arith.constant dense<0.000000e+00> : vector<1xf32>
    %76 = vector.multi_reduction <add>, %75, %cst_29 [1, 2] : vector<1x8x8xf32> to vector<1xf32>
    %77 = vector.shape_cast %76 : vector<1xf32> to vector<1x1x1xf32>
    %78 = vector.extract %77[0, 0, 0] : f32 from vector<1x1x1xf32>
    %79 = arith.addf %73, %78 : f32
    %c2_30 = arith.constant 2 : index
    %80 = memref.load %arg6[%c2_30] : memref<8xf32, #tpu.memory_space<smem>>
    memref.store %79, %arg6[%c2_30] : memref<8xf32, #tpu.memory_space<smem>>
    %c3 = arith.constant 3 : index
    %81 = memref.load %arg6[%c3] : memref<8xf32, #tpu.memory_space<smem>>
    %82 = arith.mulf %54, %56 : vector<8x1xf32>
    %83 = vector.shape_cast %82 : vector<8x1xf32> to vector<1x8x1xf32>
    %cst_31 = arith.constant dense<0.000000e+00> : vector<1xf32>
    %84 = vector.multi_reduction <add>, %83, %cst_31 [1, 2] : vector<1x8x1xf32> to vector<1xf32>
    %85 = vector.shape_cast %84 : vector<1xf32> to vector<1x1x1xf32>
    %86 = vector.extract %85[0, 0, 0] : f32 from vector<1x1x1xf32>
    %87 = arith.addf %81, %86 : f32
    %c3_32 = arith.constant 3 : index
    %88 = memref.load %arg6[%c3_32] : memref<8xf32, #tpu.memory_space<smem>>
    memref.store %87, %arg6[%c3_32] : memref<8xf32, #tpu.memory_space<smem>>
    %c4 = arith.constant 4 : index
    %89 = memref.load %arg6[%c4] : memref<8xf32, #tpu.memory_space<smem>>
    %90 = arith.mulf %54, %54 : vector<8x1xf32>
    %91 = vector.shape_cast %90 : vector<8x1xf32> to vector<1x8x1xf32>
    %cst_33 = arith.constant dense<0.000000e+00> : vector<1xf32>
    %92 = vector.multi_reduction <add>, %91, %cst_33 [1, 2] : vector<1x8x1xf32> to vector<1xf32>
    %93 = vector.shape_cast %92 : vector<1xf32> to vector<1x1x1xf32>
    %94 = vector.extract %93[0, 0, 0] : f32 from vector<1x1x1xf32>
    %95 = arith.addf %89, %94 : f32
    %c4_34 = arith.constant 4 : index
    %96 = memref.load %arg6[%c4_34] : memref<8xf32, #tpu.memory_space<smem>>
    memref.store %95, %arg6[%c4_34] : memref<8xf32, #tpu.memory_space<smem>>
    %c5 = arith.constant 5 : index
    %97 = memref.load %arg6[%c5] : memref<8xf32, #tpu.memory_space<smem>>
    %98 = arith.mulf %56, %56 : vector<8x1xf32>
    %99 = vector.shape_cast %98 : vector<8x1xf32> to vector<1x8x1xf32>
    %cst_35 = arith.constant dense<0.000000e+00> : vector<1xf32>
    %100 = vector.multi_reduction <add>, %99, %cst_35 [1, 2] : vector<1x8x1xf32> to vector<1xf32>
    %101 = vector.shape_cast %100 : vector<1xf32> to vector<1x1x1xf32>
    %102 = vector.extract %101[0, 0, 0] : f32 from vector<1x1x1xf32>
    %103 = arith.addf %97, %102 : f32
    %c5_36 = arith.constant 5 : index
    %104 = memref.load %arg6[%c5_36] : memref<8xf32, #tpu.memory_space<smem>>
    memref.store %103, %arg6[%c5_36] : memref<8xf32, #tpu.memory_space<smem>>
    %c6 = arith.constant 6 : index
    %105 = memref.load %arg6[%c6] : memref<8xf32, #tpu.memory_space<smem>>
    %106 = vector.shape_cast %54 : vector<8x1xf32> to vector<1x8x1xf32>
    %cst_37 = arith.constant dense<0.000000e+00> : vector<1xf32>
    %107 = vector.multi_reduction <add>, %106, %cst_37 [1, 2] : vector<1x8x1xf32> to vector<1xf32>
    %108 = vector.shape_cast %107 : vector<1xf32> to vector<1x1x1xf32>
    %109 = vector.extract %108[0, 0, 0] : f32 from vector<1x1x1xf32>
    %110 = arith.addf %105, %109 : f32
    %c6_38 = arith.constant 6 : index
    %111 = memref.load %arg6[%c6_38] : memref<8xf32, #tpu.memory_space<smem>>
    memref.store %110, %arg6[%c6_38] : memref<8xf32, #tpu.memory_space<smem>>
    %c7 = arith.constant 7 : index
    %112 = memref.load %arg6[%c7] : memref<8xf32, #tpu.memory_space<smem>>
    %113 = vector.shape_cast %56 : vector<8x1xf32> to vector<1x8x1xf32>
    %cst_39 = arith.constant dense<0.000000e+00> : vector<1xf32>
    %114 = vector.multi_reduction <add>, %113, %cst_39 [1, 2] : vector<1x8x1xf32> to vector<1xf32>
    %115 = vector.shape_cast %114 : vector<1xf32> to vector<1x1x1xf32>
    %116 = vector.extract %115[0, 0, 0] : f32 from vector<1x1x1xf32>
    %117 = arith.addf %112, %116 : f32
    %c7_40 = arith.constant 7 : index
    %118 = memref.load %arg6[%c7_40] : memref<8xf32, #tpu.memory_space<smem>>
    memref.store %117, %arg6[%c7_40] : memref<8xf32, #tpu.memory_space<smem>>
    %c0_i32_41 = arith.constant 0 : i32
    %119 = arith.cmpi eq, %arg0, %c0_i32_41 : i32
    %120 = arith.extui %119 : i1 to i32
    %c0_i32_42 = arith.constant 0 : i32
    %121 = arith.cmpi ne, %120, %c0_i32_42 : i32
    scf.if %121 {
      %c6_43 = arith.constant 6 : index
      %122 = memref.load %arg6[%c6_43] : memref<8xf32, #tpu.memory_space<smem>>
      %cst_44 = arith.constant 1.562500e-02 : f32
      %123 = arith.mulf %122, %cst_44 : f32
      %c7_45 = arith.constant 7 : index
      %124 = memref.load %arg6[%c7_45] : memref<8xf32, #tpu.memory_space<smem>>
      %cst_46 = arith.constant 1.562500e-02 : f32
      %125 = arith.mulf %124, %cst_46 : f32
      %c0_47 = arith.constant 0 : index
      %126 = memref.load %arg6[%c0_47] : memref<8xf32, #tpu.memory_space<smem>>
      %cst_48 = arith.constant 1.562500e-02 : f32
      %127 = arith.mulf %126, %cst_48 : f32
      %c3_49 = arith.constant 3 : index
      %128 = memref.load %arg6[%c3_49] : memref<8xf32, #tpu.memory_space<smem>>
      %cst_50 = arith.constant 2.000000e+00 : f32
      %129 = arith.mulf %cst_50, %128 : f32
      %cst_51 = arith.constant 0.001953125 : f32
      %130 = arith.mulf %129, %cst_51 : f32
      %131 = arith.subf %127, %130 : f32
      %132 = arith.mulf %123, %125 : f32
      %133 = arith.addf %131, %132 : f32
      %c1_52 = arith.constant 1 : index
      %134 = memref.load %arg6[%c1_52] : memref<8xf32, #tpu.memory_space<smem>>
      %cst_53 = arith.constant 1.562500e-02 : f32
      %135 = arith.mulf %134, %cst_53 : f32
      %c4_54 = arith.constant 4 : index
      %136 = memref.load %arg6[%c4_54] : memref<8xf32, #tpu.memory_space<smem>>
      %cst_55 = arith.constant 2.000000e+00 : f32
      %137 = arith.mulf %cst_55, %136 : f32
      %cst_56 = arith.constant 0.001953125 : f32
      %138 = arith.mulf %137, %cst_56 : f32
      %139 = arith.subf %135, %138 : f32
      %140 = arith.mulf %123, %123 : f32
      %141 = arith.addf %139, %140 : f32
      %c2_57 = arith.constant 2 : index
      %142 = memref.load %arg6[%c2_57] : memref<8xf32, #tpu.memory_space<smem>>
      %cst_58 = arith.constant 1.562500e-02 : f32
      %143 = arith.mulf %142, %cst_58 : f32
      %c5_59 = arith.constant 5 : index
      %144 = memref.load %arg6[%c5_59] : memref<8xf32, #tpu.memory_space<smem>>
      %cst_60 = arith.constant 2.000000e+00 : f32
      %145 = arith.mulf %cst_60, %144 : f32
      %cst_61 = arith.constant 0.001953125 : f32
      %146 = arith.mulf %145, %cst_61 : f32
      %147 = arith.subf %143, %146 : f32
      %148 = arith.mulf %125, %125 : f32
      %149 = arith.addf %147, %148 : f32
      %cst_62 = arith.constant 0.000000e+00 : f32
      %150 = arith.maximumf %133, %cst_62 : f32
      %151 = arith.mulf %141, %149 : f32
      %cst_63 = arith.constant 0.000000e+00 : f32
      %152 = arith.maximumf %151, %cst_63 : f32
      %153 = math.sqrt %150 : f32
      %cst_64 = arith.constant 0.000000e+00 : f32
      %154 = arith.subf %cst_64, %153 : f32
      %155 = math.sqrt %152 : f32
      %156 = math.sqrt %155 : f32
      %157 = arith.divf %154, %156 : f32
      %c0_65 = arith.constant 0 : index
      %c0_66 = arith.constant 0 : index
      %158 = memref.load %arg5[%c0_65, %c0_66] : memref<1x1xf32, #tpu.memory_space<smem>>
      memref.store %157, %arg5[%c0_65, %c0_66] : memref<1x1xf32, #tpu.memory_space<smem>>
    } else {
    }
    return
  }
  func.func @transform_0(%arg0: i32) -> (i32, i32) {
    %c0_i32 = arith.constant 0 : i32
    %c0_i32_0 = arith.constant 0 : i32
    return %arg0, %c0_i32 : i32, i32
  }
  func.func @transform_1(%arg0: i32) -> (i32, i32) {
    %c0_i32 = arith.constant 0 : i32
    %c0_i32_0 = arith.constant 0 : i32
    return %arg0, %c0_i32 : i32, i32
  }
  func.func @transform_2(%arg0: i32) -> (i32, i32) {
    %c0_i32 = arith.constant 0 : i32
    %c0_i32_0 = arith.constant 0 : i32
    %c0_i32_1 = arith.constant 0 : i32
    return %c0_i32, %c0_i32_0 : i32, i32
  }
  func.func @transform_3(%arg0: i32) -> (i32, i32) {
    %c0_i32 = arith.constant 0 : i32
    %c0_i32_0 = arith.constant 0 : i32
    %c0_i32_1 = arith.constant 0 : i32
    return %c0_i32, %c0_i32_0 : i32, i32
  }
  func.func @transform_4(%arg0: i32) -> (i32, i32) {
    %c0_i32 = arith.constant 0 : i32
    %c0_i32_0 = arith.constant 0 : i32
    %c0_i32_1 = arith.constant 0 : i32
    return %c0_i32, %c0_i32_0 : i32, i32
  }
}

</mosaic_0001>

<llo_original>
// kernel: tpu_custom_call.1
$region0: #{tpu_custom_call.1}
  #allocation0 [shape = 'u32[]', space=smem, size = 0x4, offset = 0x4, fixed_abs, tag = 'smem constant byte address 0x4 - core index']
  #allocation1 [shape = 'u32[144,128]{1,0:T(1,128)}', space=vmem, size = 0x12000, scoped, tag = 'internal scratch']
  #allocation2 [shape = 'f32[8]{0:T(128)}', space=smem, size = 0x200, scoped, tag = 'scratch operand']
  %s0 = inlined_call_operand.hbm [shape: f32[8,32], index: 0, kind: input, shape index: {}]
  %s1 = inlined_call_operand.hbm [shape: f32[8,16], index: 1, kind: input, shape index: {}]
  %s2 = inlined_call_operand.hbm [shape: f32[8,32], index: 2, kind: input, shape index: {}]
  %s3 = inlined_call_operand.hbm [shape: f32[8,16], index: 3, kind: input, shape index: {}]
  %s4 = inlined_call_operand.hbm [shape: f32[1,1], index: 4, kind: output, shape index: {}]
  %s5 = sld [smem:[#allocation0]]
  $region50: #{tpu_custom_call.1} parent=0
    _
  %s7 = ssub.s32 1, %s5
  %s8 = scalar_select 0, %s7, %s5
  $region1: #{tpu_custom_call.1} parent=0
    #allocation3 [shape = 'u8[4096]{0}', space=vmem, size = 0x1000, scoped, tag = 'input window, operand 0, single buffered']
    #allocation4 [shape = 's32[1]{0}', space=sflag, size = 0x4, scoped, tag = 'scoped memory for tpu_custom_call.1']
    #allocation5 [shape = 's32[1]{0}', space=sflag, size = 0x4, scoped, tag = 'scoped memory for tpu_custom_call.1']
    #allocation6 [shape = 'u8[4096]{0}', space=vmem, size = 0x1000, scoped, tag = 'input window, operand 1, single buffered']
    #allocation7 [shape = 's32[1]{0}', space=sflag, size = 0x4, scoped, tag = 'scoped memory for tpu_custom_call.1']
    #allocation8 [shape = 'u8[4096]{0}', space=vmem, size = 0x1000, scoped, tag = 'input window, operand 2, single buffered']
    #allocation9 [shape = 'u8[4096]{0}', space=vmem, size = 0x1000, scoped, tag = 'input window, operand 3, single buffered']
    #allocation10 [shape = 's32[1]{0}', space=sflag, size = 0x4, scoped, tag = 'scoped memory for tpu_custom_call.1']
    #allocation11 [shape = 'u8[512]{0}', space=smem, size = 0x200, scoped, tag = 'output window, operand 0, single buffered']
    %9 = vsyncpa [#allocation4], 0
    %10 = vsyncpa [#allocation7], 0
    %11 = vsyncpa [#allocation10], 0
    %12 = vsyncpa [#allocation5], 0
    // Predicated region
    $region2: #{tpu_custom_call.1} parent=1 // pred_check
      _
    $region3: #{tpu_custom_call.1} parent=1 // pred_check_branch
      %14 = sbr.rel (0) target = $region5
    $region4: #{tpu_custom_call.1} parent=1 // pred_region
      %s16 = ssub.s32 128, 128
      %17 = vsyncadd [#allocation4], %s16
      %s19 = sshll.u32 [#allocation3], 4
      %s20 = int_to_ptr.vmem [resolvable:$true] %s19
      %22 = dma.hbm_to_vmem [thread:$0]  %s0, 128, %s20, [#allocation4]
    $region5: #{tpu_custom_call.1} parent=1 // pred_fallthru
      _
    // Predicated region
    $region6: #{tpu_custom_call.1} parent=1 // pred_check
      _
    $region7: #{tpu_custom_call.1} parent=1 // pred_check_branch
      %24 = sbr.rel (0) target = $region9
    $region8: #{tpu_custom_call.1} parent=1 // pred_region
      %s26 = ssub.s32 128, 128
      %27 = vsyncadd [#allocation7], %s26
      %s29 = sshll.u32 [#allocation6], 4
      %s30 = int_to_ptr.vmem [resolvable:$true] %s29
      %32 = dma.hbm_to_vmem [thread:$0]  %s1, 128, %s30, [#allocation7]
    $region9: #{tpu_custom_call.1} parent=1 // pred_fallthru
      _
    // Predicated region
    $region10: #{tpu_custom_call.1} parent=1 // pred_check
      _
    $region11: #{tpu_custom_call.1} parent=1 // pred_check_branch
      %34 = sbr.rel (0) target = $region13
    $region12: #{tpu_custom_call.1} parent=1 // pred_region
      %s36 = ssub.s32 128, 128
      %37 = vsyncadd [#allocation7], %s36
      %s39 = sshll.u32 [#allocation8], 4
      %s40 = int_to_ptr.vmem [resolvable:$true] %s39
      %42 = dma.hbm_to_vmem [thread:$0]  %s2, 128, %s40, [#allocation7]
    $region13: #{tpu_custom_call.1} parent=1 // pred_fallthru
      _
    // Predicated region
    $region14: #{tpu_custom_call.1} parent=1 // pred_check
      _
    $region15: #{tpu_custom_call.1} parent=1 // pred_check_branch
      %44 = sbr.rel (0) target = $region17
    $region16: #{tpu_custom_call.1} parent=1 // pred_region
      %s46 = ssub.s32 128, 128
      %47 = vsyncadd [#allocation10], %s46
      %s49 = sshll.u32 [#allocation9], 4
      %s50 = int_to_ptr.vmem [resolvable:$true] %s49
      %52 = dma.hbm_to_vmem [thread:$0]  %s3, 128, %s50, [#allocation10]
    $region17: #{tpu_custom_call.1} parent=1 // pred_fallthru
      _
    // Predicated region
    $region18: #{tpu_custom_call.1} parent=1 // pred_check
      _
    $region19: #{tpu_custom_call.1} parent=1 // pred_check_branch
      %54 = sbr.rel (0) target = $region21
    $region20: #{tpu_custom_call.1} parent=1 // pred_region
      %55 = dma.done [#allocation4], 128
    $region21: #{tpu_custom_call.1} parent=1 // pred_fallthru
      _
    // Predicated region
    $region22: #{tpu_custom_call.1} parent=1 // pred_check
      _
    $region23: #{tpu_custom_call.1} parent=1 // pred_check_branch
      %57 = sbr.rel (0) target = $region25
    $region24: #{tpu_custom_call.1} parent=1 // pred_region
      %58 = dma.done [#allocation7], 128
    $region25: #{tpu_custom_call.1} parent=1 // pred_fallthru
      _
    // Predicated region
    $region26: #{tpu_custom_call.1} parent=1 // pred_check
      _
    $region27: #{tpu_custom_call.1} parent=1 // pred_check_branch
      %60 = sbr.rel (0) target = $region29
    $region28: #{tpu_custom_call.1} parent=1 // pred_region
      %61 = dma.done [#allocation7], 128
    $region29: #{tpu_custom_call.1} parent=1 // pred_fallthru
      _
    // Predicated region
    $region30: #{tpu_custom_call.1} parent=1 // pred_check
      _
    $region31: #{tpu_custom_call.1} parent=1 // pred_check_branch
      %63 = sbr.rel (0) target = $region33
    $region32: #{tpu_custom_call.1} parent=1 // pred_region
      %64 = dma.done [#allocation10], 128
    $region33: #{tpu_custom_call.1} parent=1 // pred_fallthru
      _
    %p65 = scmp.eq.s32.totalorder 0, 0
    // Predicated region
    $region34: #{tpu_custom_call.1} parent=1 // pred_check
      %p66 = pneg %p65
    $region35: #{tpu_custom_call.1} parent=1 // pred_check_branch
      %68 = sbr.rel (%p66) target = $region37
    $region36: #{tpu_custom_call.1} parent=1 // pred_region
      %s69 = scalar_lea.smem [#allocation2], 0
      %70 = sst [smem:[%s69]] 0.0
      %s71 = scalar_lea.smem [#allocation2], 1
      %72 = sst [smem:[%s71]] 0.0
      %s73 = scalar_lea.smem [#allocation2], 2
      %74 = sst [smem:[%s73]] 0.0
      %s75 = scalar_lea.smem [#allocation2], 3
      %76 = sst [smem:[%s75]] 0.0
      %s77 = scalar_lea.smem [#allocation2], 4
      %78 = sst [smem:[%s77]] 0.0
      %s79 = scalar_lea.smem [#allocation2], 5
      %80 = sst [smem:[%s79]] 0.0
      %s81 = scalar_lea.smem [#allocation2], 6
      %82 = sst [smem:[%s81]] 0.0
      %s83 = scalar_lea.smem [#allocation2], 7
      %84 = sst [smem:[%s83]] 0.0
    $region37: #{tpu_custom_call.1} parent=1 // pred_fallthru
      _
    %s85 = smul.u32 0, 8
    %v86 = vlaneseq
    %v87 = vshrl.u32 %v86, 7
    %v88 = vstv %s85
    %v89 = vadd.s32 %v88, %v87
    %vm90 = vcmp.lt.s32.totalorder %v89, 8
    %v91 = vld [vmem:[#allocation3] sm:$0xff]
    %v92 = vld [vmem:[#allocation8] sm:$0xff]
    %v93 = vmul.f32 %v91, %v91
    %vm94 = vcmask 261120
    %v95 = vsel %vm94, %v93, 0.0
    %96 = vadd.xlane.f32.xlu0 %v95
    %v97 = vpop.xlane.xlu0 %96
    %v98 = vmul.f32 %v92, %v92
    %v100 = vsel %vm94, 1.0, 0
    %v103 = vsel %vm94, %v98, 0
    %105 = vmatprep.subr.mxu0 0.0
    %106 = vmatpush1.xpose.msra.mxu0 0.0
    %107 = vmatprep.subr.mxu0 0.0
    %108 = vmatpush1.xpose.msra.mxu0 0.0
    %109 = vmatprep.subr.mxu0 0.0
    %110 = vmatpush1.xpose.msra.mxu0 0.0
    %111 = vmatprep.subr.mxu0 0.0
    %112 = vmatpush1.xpose.msra.mxu0 0.0
    %113 = vmatprep.subr.mxu0 0.0
    %114 = vmatpush1.xpose.msra.mxu0 0.0
    %115 = vmatprep.subr.mxu0 0.0
    %116 = vmatpush1.xpose.msra.mxu0 0.0
    %117 = vmatprep.subr.mxu0 0.0
    %118 = vmatpush1.xpose.msra.mxu0 0.0
    %119 = vmatprep.subr.mxu0 0.0
    %120 = vmatpush1.xpose.msra.mxu0 0.0
    %121 = vmatprep.subr.mxu0 0.0
    %122 = vmatpush1.xpose.msra.mxu0 0.0
    %123 = vmatprep.subr.mxu0 0.0
    %124 = vmatpush1.xpose.msra.mxu0 0.0
    %125 = vmatprep.subr.mxu0 0.0
    %126 = vmatpush1.xpose.msra.mxu0 0.0
    %127 = vmatprep.subr.mxu0 0.0
    %128 = vmatpush1.xpose.msra.mxu0 0.0
    %129 = vmatprep.subr.mxu0 0.0
    %130 = vmatpush1.xpose.msra.mxu0 0.0
    %131 = vmatprep.subr.mxu0 0.0
    %132 = vmatpush1.xpose.msra.mxu0 0.0
    %133 = vmatprep.subr.mxu0 0.0
    %134 = vmatpush1.xpose.msra.mxu0 0.0
    %135 = vmatprep.subr.mxu0 0.0
    %136 = vmatpush1.xpose.msra.mxu0 %v103
    %137 = vmatprep.subr.mxu0 0.0
    %138 = vmatpush2.xpose.msra.mxu0 0.0
    %139 = vmatprep.subr.mxu0 0.0
    %140 = vmatpush2.xpose.msra.mxu0 0.0
    %141 = vmatprep.subr.mxu0 0.0
    %142 = vmatpush2.xpose.msra.mxu0 0.0
    %143 = vmatprep.subr.mxu0 0.0
    %144 = vmatpush2.xpose.msra.mxu0 0.0
    %145 = vmatprep.subr.mxu0 0.0
    %146 = vmatpush2.xpose.msra.mxu0 0.0
    %147 = vmatprep.subr.mxu0 0.0
    %148 = vmatpush2.xpose.msra.mxu0 0.0
    %149 = vmatprep.subr.mxu0 0.0
    %150 = vmatpush2.xpose.msra.mxu0 0.0
    %151 = vmatprep.subr.mxu0 0.0
    %152 = vmatpush2.xpose.msra.mxu0 0.0
    %153 = vmatprep.subr.mxu0 0.0
    %154 = vmatpush2.xpose.msra.mxu0 0.0
    %155 = vmatprep.subr.mxu0 0.0
    %156 = vmatpush2.xpose.msra.mxu0 0.0
    %157 = vmatprep.subr.mxu0 0.0
    %158 = vmatpush2.xpose.msra.mxu0 0.0
    %159 = vmatprep.subr.mxu0 0.0
    %160 = vmatpush2.xpose.msra.mxu0 0.0
    %161 = vmatprep.subr.mxu0 0.0
    %162 = vmatpush2.xpose.msra.mxu0 0.0
    %163 = vmatprep.subr.mxu0 0.0
    %164 = vmatpush2.xpose.msra.mxu0 0.0
    %165 = vmatprep.subr.mxu0 0.0
    %166 = vmatpush2.xpose.msra.mxu0 0.0
    %167 = vmatprep.subr.mxu0 0.0
    %168 = vmatpush2.xpose.msra.mxu0 0.0
    %169 = vmatprep.mubr.f32.mxu0 0.0
    %170 = vmatmul.mubr.f32.gmra.mxu0 %v100
    %v171 = vpop.f32.mrf.mxu0
    %v172 = vadd.f32 0.0, %v171
    %v173 = vpop.f32.mrf.mxu0
    %174 = vdwg.mxu0
    %v176 = vsel %vm94, %v91, 0
    %v179 = vsel %vm94, %v92, 0
    %181 = vmatprep.subr.mxu0 0.0
    %182 = vmatpush1.xpose.msra.mxu0 0.0
    %183 = vmatprep.subr.mxu0 0.0
    %184 = vmatpush1.xpose.msra.mxu0 0.0
    %185 = vmatprep.subr.mxu0 0.0
    %186 = vmatpush1.xpose.msra.mxu0 0.0
    %187 = vmatprep.subr.mxu0 0.0
    %188 = vmatpush1.xpose.msra.mxu0 0.0
    %189 = vmatprep.subr.mxu0 0.0
    %190 = vmatpush1.xpose.msra.mxu0 0.0
    %191 = vmatprep.subr.mxu0 0.0
    %192 = vmatpush1.xpose.msra.mxu0 0.0
    %193 = vmatprep.subr.mxu0 0.0
    %194 = vmatpush1.xpose.msra.mxu0 0.0
    %195 = vmatprep.subr.mxu0 0.0
    %196 = vmatpush1.xpose.msra.mxu0 0.0
    %197 = vmatprep.subr.mxu0 0.0
    %198 = vmatpush1.xpose.msra.mxu0 0.0
    %199 = vmatprep.subr.mxu0 0.0
    %200 = vmatpush1.xpose.msra.mxu0 0.0
    %201 = vmatprep.subr.mxu0 0.0
    %202 = vmatpush1.xpose.msra.mxu0 0.0
    %203 = vmatprep.subr.mxu0 0.0
    %204 = vmatpush1.xpose.msra.mxu0 0.0
    %205 = vmatprep.subr.mxu0 0.0
    %206 = vmatpush1.xpose.msra.mxu0 0.0
    %207 = vmatprep.subr.mxu0 0.0
    %208 = vmatpush1.xpose.msra.mxu0 0.0
    %209 = vmatprep.subr.mxu0 0.0
    %210 = vmatpush1.xpose.msra.mxu0 0.0
    %211 = vmatprep.subr.mxu0 0.0
    %212 = vmatpush1.xpose.msra.mxu0 %v179
    %213 = vmatprep.subr.mxu0 0.0
    %214 = vmatpush2.xpose.msra.mxu0 0.0
    %215 = vmatprep.subr.mxu0 0.0
    %216 = vmatpush2.xpose.msra.mxu0 0.0
    %217 = vmatprep.subr.mxu0 0.0
    %218 = vmatpush2.xpose.msra.mxu0 0.0
    %219 = vmatprep.subr.mxu0 0.0
    %220 = vmatpush2.xpose.msra.mxu0 0.0
    %221 = vmatprep.subr.mxu0 0.0
    %222 = vmatpush2.xpose.msra.mxu0 0.0
    %223 = vmatprep.subr.mxu0 0.0
    %224 = vmatpush2.xpose.msra.mxu0 0.0
    %225 = vmatprep.subr.mxu0 0.0
    %226 = vmatpush2.xpose.msra.mxu0 0.0
    %227 = vmatprep.subr.mxu0 0.0
    %228 = vmatpush2.xpose.msra.mxu0 0.0
    %229 = vmatprep.subr.mxu0 0.0
    %230 = vmatpush2.xpose.msra.mxu0 0.0
    %231 = vmatprep.subr.mxu0 0.0
    %232 = vmatpush2.xpose.msra.mxu0 0.0
    %233 = vmatprep.subr.mxu0 0.0
    %234 = vmatpush2.xpose.msra.mxu0 0.0
    %235 = vmatprep.subr.mxu0 0.0
    %236 = vmatpush2.xpose.msra.mxu0 0.0
    %237 = vmatprep.subr.mxu0 0.0
    %238 = vmatpush2.xpose.msra.mxu0 0.0
    %239 = vmatprep.subr.mxu0 0.0
    %240 = vmatpush2.xpose.msra.mxu0 0.0
    %241 = vmatprep.subr.mxu0 0.0
    %242 = vmatpush2.xpose.msra.mxu0 0.0
    %243 = vmatprep.subr.mxu0 0.0
    %244 = vmatpush2.xpose.msra.mxu0 0.0
    %245 = vmatprep.mubr.f32.mxu0 0.0
    %246 = vmatmul.mubr.f32.gmra.mxu0 %v176
    %v247 = vpop.f32.mrf.mxu0
    %v248 = vadd.f32 0.0, %v247
    %v249 = vpop.f32.mrf.mxu0
    %250 = vdwg.mxu0
    %v251 = vlaneseq
    %v252 = vshrl.u32 %v251, 7
    %v253 = vsub.s32 0, %v252
    %v254 = vrot.slane %v172, %v253
    %v255 = vadd.f32 %v97, %v254
    %v256 = vmul.f32 %v248, 2.0
    %v257 = vsub.f32 %v255, %v256
    %v258 = vmax.f32 %v257, 0.0
    %v259 = vrsqrt.pop %v258
    %v260 = vmul.f32 %v258, %v259
    %vm261 = vcmp.eq.f32.partialorder %v258, inf
    %v262 = vsel %vm261, %v258, %v260
    %vm263 = vcmp.eq.f32.partialorder %v258, 0.0
    %v264 = vand.u32 %v258, 2147483648
    %v265 = vsel %vm263, %v264, %v262
    %v266 = vsel %vm90, 1, 0
    %vm267 = vcmp.eq.s32.totalorder %v266, 1
    %v268 = vsel %vm267, %v265, 0.0
    %v269 = vld [vmem:[#allocation6] sm:$0xff]
    %v270 = vld [vmem:[#allocation9] sm:$0xff]
    %v271 = vmul.f32 %v269, %v269
    %vm272 = vcmask 130048
    %v273 = vsel %vm272, %v271, 0.0
    %274 = vadd.xlane.f32.xlu0 %v273
    %v275 = vpop.xlane.xlu0 %274
    %v276 = vmul.f32 %v270, %v270
    %v277 = vsel %vm272, 1.0, 0
    %v280 = vsel %vm272, %v276, 0
    %282 = vmatprep.subr.mxu0 0.0
    %283 = vmatpush1.xpose.msra.mxu0 0.0
    %284 = vmatprep.subr.mxu0 0.0
    %285 = vmatpush1.xpose.msra.mxu0 0.0
    %286 = vmatprep.subr.mxu0 0.0
    %287 = vmatpush1.xpose.msra.mxu0 0.0
    %288 = vmatprep.subr.mxu0 0.0
    %289 = vmatpush1.xpose.msra.mxu0 0.0
    %290 = vmatprep.subr.mxu0 0.0
    %291 = vmatpush1.xpose.msra.mxu0 0.0
    %292 = vmatprep.subr.mxu0 0.0
    %293 = vmatpush1.xpose.msra.mxu0 0.0
    %294 = vmatprep.subr.mxu0 0.0
    %295 = vmatpush1.xpose.msra.mxu0 0.0
    %296 = vmatprep.subr.mxu0 0.0
    %297 = vmatpush1.xpose.msra.mxu0 0.0
    %298 = vmatprep.subr.mxu0 0.0
    %299 = vmatpush1.xpose.msra.mxu0 0.0
    %300 = vmatprep.subr.mxu0 0.0
    %301 = vmatpush1.xpose.msra.mxu0 0.0
    %302 = vmatprep.subr.mxu0 0.0
    %303 = vmatpush1.xpose.msra.mxu0 0.0
    %304 = vmatprep.subr.mxu0 0.0
    %305 = vmatpush1.xpose.msra.mxu0 0.0
    %306 = vmatprep.subr.mxu0 0.0
    %307 = vmatpush1.xpose.msra.mxu0 0.0
    %308 = vmatprep.subr.mxu0 0.0
    %309 = vmatpush1.xpose.msra.mxu0 0.0
    %310 = vmatprep.subr.mxu0 0.0
    %311 = vmatpush1.xpose.msra.mxu0 0.0
    %312 = vmatprep.subr.mxu0 0.0
    %313 = vmatpush1.xpose.msra.mxu0 %v280
    %314 = vmatprep.subr.mxu0 0.0
    %315 = vmatpush2.xpose.msra.mxu0 0.0
    %316 = vmatprep.subr.mxu0 0.0
    %317 = vmatpush2.xpose.msra.mxu0 0.0
    %318 = vmatprep.subr.mxu0 0.0
    %319 = vmatpush2.xpose.msra.mxu0 0.0
    %320 = vmatprep.subr.mxu0 0.0
    %321 = vmatpush2.xpose.msra.mxu0 0.0
    %322 = vmatprep.subr.mxu0 0.0
    %323 = vmatpush2.xpose.msra.mxu0 0.0
    %324 = vmatprep.subr.mxu0 0.0
    %325 = vmatpush2.xpose.msra.mxu0 0.0
    %326 = vmatprep.subr.mxu0 0.0
    %327 = vmatpush2.xpose.msra.mxu0 0.0
    %328 = vmatprep.subr.mxu0 0.0
    %329 = vmatpush2.xpose.msra.mxu0 0.0
    %330 = vmatprep.subr.mxu0 0.0
    %331 = vmatpush2.xpose.msra.mxu0 0.0
    %332 = vmatprep.subr.mxu0 0.0
    %333 = vmatpush2.xpose.msra.mxu0 0.0
    %334 = vmatprep.subr.mxu0 0.0
    %335 = vmatpush2.xpose.msra.mxu0 0.0
    %336 = vmatprep.subr.mxu0 0.0
    %337 = vmatpush2.xpose.msra.mxu0 0.0
    %338 = vmatprep.subr.mxu0 0.0
    %339 = vmatpush2.xpose.msra.mxu0 0.0
    %340 = vmatprep.subr.mxu0 0.0
    %341 = vmatpush2.xpose.msra.mxu0 0.0
    %342 = vmatprep.subr.mxu0 0.0
    %343 = vmatpush2.xpose.msra.mxu0 0.0
    %344 = vmatprep.subr.mxu0 0.0
    %345 = vmatpush2.xpose.msra.mxu0 0.0
    %346 = vmatprep.mubr.f32.mxu0 0.0
    %347 = vmatmul.mubr.f32.gmra.mxu0 %v277
    %v348 = vpop.f32.mrf.mxu0
    %v349 = vadd.f32 0.0, %v348
    %v350 = vpop.f32.mrf.mxu0
    %351 = vdwg.mxu0
    %v353 = vsel %vm272, %v269, 0
    %v356 = vsel %vm272, %v270, 0
    %358 = vmatprep.subr.mxu0 0.0
    %359 = vmatpush1.xpose.msra.mxu0 0.0
    %360 = vmatprep.subr.mxu0 0.0
    %361 = vmatpush1.xpose.msra.mxu0 0.0
    %362 = vmatprep.subr.mxu0 0.0
    %363 = vmatpush1.xpose.msra.mxu0 0.0
    %364 = vmatprep.subr.mxu0 0.0
    %365 = vmatpush1.xpose.msra.mxu0 0.0
    %366 = vmatprep.subr.mxu0 0.0
    %367 = vmatpush1.xpose.msra.mxu0 0.0
    %368 = vmatprep.subr.mxu0 0.0
    %369 = vmatpush1.xpose.msra.mxu0 0.0
    %370 = vmatprep.subr.mxu0 0.0
    %371 = vmatpush1.xpose.msra.mxu0 0.0
    %372 = vmatprep.subr.mxu0 0.0
    %373 = vmatpush1.xpose.msra.mxu0 0.0
    %374 = vmatprep.subr.mxu0 0.0
    %375 = vmatpush1.xpose.msra.mxu0 0.0
    %376 = vmatprep.subr.mxu0 0.0
    %377 = vmatpush1.xpose.msra.mxu0 0.0
    %378 = vmatprep.subr.mxu0 0.0
    %379 = vmatpush1.xpose.msra.mxu0 0.0
    %380 = vmatprep.subr.mxu0 0.0
    %381 = vmatpush1.xpose.msra.mxu0 0.0
    %382 = vmatprep.subr.mxu0 0.0
    %383 = vmatpush1.xpose.msra.mxu0 0.0
    %384 = vmatprep.subr.mxu0 0.0
    %385 = vmatpush1.xpose.msra.mxu0 0.0
    %386 = vmatprep.subr.mxu0 0.0
    %387 = vmatpush1.xpose.msra.mxu0 0.0
    %388 = vmatprep.subr.mxu0 0.0
    %389 = vmatpush1.xpose.msra.mxu0 %v356
    %390 = vmatprep.subr.mxu0 0.0
    %391 = vmatpush2.xpose.msra.mxu0 0.0
    %392 = vmatprep.subr.mxu0 0.0
    %393 = vmatpush2.xpose.msra.mxu0 0.0
    %394 = vmatprep.subr.mxu0 0.0
    %395 = vmatpush2.xpose.msra.mxu0 0.0
    %396 = vmatprep.subr.mxu0 0.0
    %397 = vmatpush2.xpose.msra.mxu0 0.0
    %398 = vmatprep.subr.mxu0 0.0
    %399 = vmatpush2.xpose.msra.mxu0 0.0
    %400 = vmatprep.subr.mxu0 0.0
    %401 = vmatpush2.xpose.msra.mxu0 0.0
    %402 = vmatprep.subr.mxu0 0.0
    %403 = vmatpush2.xpose.msra.mxu0 0.0
    %404 = vmatprep.subr.mxu0 0.0
    %405 = vmatpush2.xpose.msra.mxu0 0.0
    %406 = vmatprep.subr.mxu0 0.0
    %407 = vmatpush2.xpose.msra.mxu0 0.0
    %408 = vmatprep.subr.mxu0 0.0
    %409 = vmatpush2.xpose.msra.mxu0 0.0
    %410 = vmatprep.subr.mxu0 0.0
    %411 = vmatpush2.xpose.msra.mxu0 0.0
    %412 = vmatprep.subr.mxu0 0.0
    %413 = vmatpush2.xpose.msra.mxu0 0.0
    %414 = vmatprep.subr.mxu0 0.0
    %415 = vmatpush2.xpose.msra.mxu0 0.0
    %416 = vmatprep.subr.mxu0 0.0
    %417 = vmatpush2.xpose.msra.mxu0 0.0
    %418 = vmatprep.subr.mxu0 0.0
    %419 = vmatpush2.xpose.msra.mxu0 0.0
    %420 = vmatprep.subr.mxu0 0.0
    %421 = vmatpush2.xpose.msra.mxu0 0.0
    %422 = vmatprep.mubr.f32.mxu0 0.0
    %423 = vmatmul.mubr.f32.gmra.mxu0 %v353
    %v424 = vpop.f32.mrf.mxu0
    %v425 = vadd.f32 0.0, %v424
    %v426 = vpop.f32.mrf.mxu0
    %427 = vdwg.mxu0
    %v428 = vlaneseq
    %v429 = vshrl.u32 %v428, 7
    %v430 = vsub.s32 0, %v429
    %v431 = vrot.slane %v349, %v430
    %v432 = vadd.f32 %v275, %v431
    %v433 = vmul.f32 %v425, 2.0
    %v434 = vsub.f32 %v432, %v433
    %v435 = vmax.f32 %v434, 0.0
    %v436 = vrsqrt.pop %v435
    %v437 = vmul.f32 %v435, %v436
    %vm438 = vcmp.eq.f32.partialorder %v435, inf
    %v439 = vsel %vm438, %v435, %v437
    %vm440 = vcmp.eq.f32.partialorder %v435, 0.0
    %v441 = vand.u32 %v435, 2147483648
    %v442 = vsel %vm440, %v441, %v439
    %v443 = vsel %vm267, %v442, 0.0
    %vm444 = vcmask 64512
    %v445 = vsel %vm444, %v268, 0.0
    %446 = vadd.xlane.f32.xlu0 %v445
    %v447 = vpop.xlane.xlu0 %446
    %v448 = vsel %vm444, %v443, 0.0
    %449 = vadd.xlane.f32.xlu0 %v448
    %v450 = vpop.xlane.xlu0 %449
    %s451 = sld [smem:[#allocation2]]
    %v452 = vmul.f32 %v268, %v443
    %v453 = vsel %vm444, %v452, 0.0
    %454 = vadd.xlane.f32.xlu0 %v453
    %v455 = vpop.xlane.xlu0 %454
    %v456 = vrot.slane %v455, 4
    %v457 = vadd.f32 %v455, %v456
    %v458 = vrot.slane %v457, 2
    %v459 = vadd.f32 %v457, %v458
    %v460 = vrot.slane %v459, 1
    %v461 = vadd.f32 %v459, %v460
    %s462 = vtos %v461
    %s463 = sadd.f32 %s451, %s462
    %s464 = scalar_lea.smem [#allocation2], 0
    %465 = sst [smem:[%s464]] %s463
    %s466 = sld [smem:[#allocation2 + $0x1]]
    %v467 = vmul.f32 %v268, %v268
    %v468 = vsel %vm444, %v467, 0.0
    %469 = vadd.xlane.f32.xlu0 %v468
    %v470 = vpop.xlane.xlu0 %469
    %v471 = vrot.slane %v470, 4
    %v472 = vadd.f32 %v470, %v471
    %v473 = vrot.slane %v472, 2
    %v474 = vadd.f32 %v472, %v473
    %v475 = vrot.slane %v474, 1
    %v476 = vadd.f32 %v474, %v475
    %s477 = vtos %v476
    %s478 = sadd.f32 %s466, %s477
    %s479 = scalar_lea.smem [#allocation2], 1
    %480 = sst [smem:[%s479]] %s478
    %s481 = sld [smem:[#allocation2 + $0x2]]
    %v482 = vmul.f32 %v443, %v443
    %v483 = vsel %vm444, %v482, 0.0
    %484 = vadd.xlane.f32.xlu0 %v483
    %v485 = vpop.xlane.xlu0 %484
    %v486 = vrot.slane %v485, 4
    %v487 = vadd.f32 %v485, %v486
    %v488 = vrot.slane %v487, 2
    %v489 = vadd.f32 %v487, %v488
    %v490 = vrot.slane %v489, 1
    %v491 = vadd.f32 %v489, %v490
    %s492 = vtos %v491
    %s493 = sadd.f32 %s481, %s492
    %s494 = scalar_lea.smem [#allocation2], 2
    %495 = sst [smem:[%s494]] %s493
    %s496 = sld [smem:[#allocation2 + $0x3]]
    %v497 = vmul.f32 %v447, %v450
    %vm498 = vcmask 7168
    %v499 = vsel %vm498, %v497, 0.0
    %500 = vadd.xlane.f32.xlu0 %v499
    %v501 = vpop.xlane.xlu0 %500
    %v502 = vrot.slane %v501, 4
    %v503 = vadd.f32 %v501, %v502
    %v504 = vrot.slane %v503, 2
    %v505 = vadd.f32 %v503, %v504
    %v506 = vrot.slane %v505, 1
    %v507 = vadd.f32 %v505, %v506
    %s508 = vtos %v507
    %s509 = sadd.f32 %s496, %s508
    %s510 = scalar_lea.smem [#allocation2], 3
    %511 = sst [smem:[%s510]] %s509
    %s512 = sld [smem:[#allocation2 + $0x4]]
    %v513 = vmul.f32 %v447, %v447
    %v514 = vsel %vm498, %v513, 0.0
    %515 = vadd.xlane.f32.xlu0 %v514
    %v516 = vpop.xlane.xlu0 %515
    %v517 = vrot.slane %v516, 4
    %v518 = vadd.f32 %v516, %v517
    %v519 = vrot.slane %v518, 2
    %v520 = vadd.f32 %v518, %v519
    %v521 = vrot.slane %v520, 1
    %v522 = vadd.f32 %v520, %v521
    %s523 = vtos %v522
    %s524 = sadd.f32 %s512, %s523
    %s525 = scalar_lea.smem [#allocation2], 4
    %526 = sst [smem:[%s525]] %s524
    %s527 = sld [smem:[#allocation2 + $0x5]]
    %v528 = vmul.f32 %v450, %v450
    %v529 = vsel %vm498, %v528, 0.0
    %530 = vadd.xlane.f32.xlu0 %v529
    %v531 = vpop.xlane.xlu0 %530
    %v532 = vrot.slane %v531, 4
    %v533 = vadd.f32 %v531, %v532
    %v534 = vrot.slane %v533, 2
    %v535 = vadd.f32 %v533, %v534
    %v536 = vrot.slane %v535, 1
    %v537 = vadd.f32 %v535, %v536
    %s538 = vtos %v537
    %s539 = sadd.f32 %s527, %s538
    %s540 = scalar_lea.smem [#allocation2], 5
    %541 = sst [smem:[%s540]] %s539
    %s542 = sld [smem:[#allocation2 + $0x6]]
    %v543 = vsel %vm498, %v447, 0.0
    %544 = vadd.xlane.f32.xlu0 %v543
    %v545 = vpop.xlane.xlu0 %544
    %v546 = vrot.slane %v545, 4
    %v547 = vadd.f32 %v545, %v546
    %v548 = vrot.slane %v547, 2
    %v549 = vadd.f32 %v547, %v548
    %v550 = vrot.slane %v549, 1
    %v551 = vadd.f32 %v549, %v550
    %s552 = vtos %v551
    %s553 = sadd.f32 %s542, %s552
    %s554 = scalar_lea.smem [#allocation2], 6
    %555 = sst [smem:[%s554]] %s553
    %s556 = sld [smem:[#allocation2 + $0x7]]
    %v557 = vsel %vm498, %v450, 0.0
    %558 = vadd.xlane.f32.xlu0 %v557
    %v559 = vpop.xlane.xlu0 %558
    %v560 = vrot.slane %v559, 4
    %v561 = vadd.f32 %v559, %v560
    %v562 = vrot.slane %v561, 2
    %v563 = vadd.f32 %v561, %v562
    %v564 = vrot.slane %v563, 1
    %v565 = vadd.f32 %v563, %v564
    %s566 = vtos %v565
    %s567 = sadd.f32 %s556, %s566
    %s568 = scalar_lea.smem [#allocation2], 7
    %569 = sst [smem:[%s568]] %s567
    // Predicated region
    $region38: #{tpu_custom_call.1} parent=1 // pred_check
      %p570 = pneg %p65
    $region39: #{tpu_custom_call.1} parent=1 // pred_check_branch
      %572 = sbr.rel (%p570) target = $region41
    $region40: #{tpu_custom_call.1} parent=1 // pred_region
      %s573 = sld [smem:[#allocation2 + $0x6]]
      %s574 = smul.f32 %s573, 0.015625
      %s575 = sld [smem:[#allocation2 + $0x7]]
      %s576 = smul.f32 %s575, 0.015625
      %s577 = sld [smem:[#allocation2]]
      %s578 = smul.f32 %s577, 0.015625
      %s579 = sld [smem:[#allocation2 + $0x3]]
      %s580 = smul.f32 %s579, 2.0
      %s581 = smul.f32 %s580, 0.001953125
      %s582 = ssub.f32 %s578, %s581
      %s583 = smul.f32 %s574, %s576
      %s584 = sadd.f32 %s582, %s583
      %s585 = sld [smem:[#allocation2 + $0x1]]
      %s586 = smul.f32 %s585, 0.015625
      %s587 = sld [smem:[#allocation2 + $0x4]]
      %s588 = smul.f32 %s587, 2.0
      %s589 = smul.f32 %s588, 0.001953125
      %s590 = ssub.f32 %s586, %s589
      %s591 = smul.f32 %s574, %s574
      %s592 = sadd.f32 %s590, %s591
      %s593 = sld [smem:[#allocation2 + $0x2]]
      %s594 = smul.f32 %s593, 0.015625
      %s595 = sld [smem:[#allocation2 + $0x5]]
      %s596 = smul.f32 %s595, 2.0
      %s597 = smul.f32 %s596, 0.001953125
      %s598 = ssub.f32 %s594, %s597
      %s599 = smul.f32 %s576, %s576
      %s600 = sadd.f32 %s598, %s599
      %s601 = smax.f32 %s584, 0.0
      %s602 = smul.f32 %s592, %s600
      %s603 = smax.f32 %s602, 0.0
      %v604 = vstv %s601
      %v605 = vrsqrt.pop %v604
      %v606 = vmul.f32 %v604, %v605
      %vm607 = vcmp.eq.f32.partialorder %v604, inf
      %v608 = vsel %vm607, %v604, %v606
      %vm609 = vcmp.eq.f32.partialorder %v604, 0.0
      %v610 = vand.u32 %v604, 2147483648
      %v611 = vsel %vm609, %v610, %v608
      %s612 = vtos %v611
      %s613 = ssub.f32 0.0, %s612
      %v614 = vstv %s603
      %v615 = vrsqrt.pop %v614
      %v616 = vmul.f32 %v614, %v615
      %vm617 = vcmp.eq.f32.partialorder %v614, inf
      %v618 = vsel %vm617, %v614, %v616
      %vm619 = vcmp.eq.f32.partialorder %v614, 0.0
      %v620 = vand.u32 %v614, 2147483648
      %v621 = vsel %vm619, %v620, %v618
      %s622 = vtos %v621
      %v623 = vstv %s622
      %v624 = vrsqrt.pop %v623
      %v625 = vmul.f32 %v623, %v624
      %vm626 = vcmp.eq.f32.partialorder %v623, inf
      %v627 = vsel %vm626, %v623, %v625
      %vm628 = vcmp.eq.f32.partialorder %v623, 0.0
      %v629 = vand.u32 %v623, 2147483648
      %v630 = vsel %vm628, %v629, %v627
      %s631 = vtos %v630
      %v632 = vstv %s631
      %v633 = vrcp.pop %v632
      %s634 = vtos %v633
      %s635 = smul.f32 %s613, %s634
      %s636 = scalar_lea.smem [#allocation11], 0
      %637 = sst [smem:[%s636]] %s635
    $region41: #{tpu_custom_call.1} parent=1 // pred_fallthru
      _
    // Predicated region
    $region42: #{tpu_custom_call.1} parent=1 // pred_check
      _
    $region43: #{tpu_custom_call.1} parent=1 // pred_check_branch
      %639 = sbr.rel (0) target = $region45
    $region44: #{tpu_custom_call.1} parent=1 // pred_region
      %s641 = ssub.s32 16, 16
      %642 = vsyncadd [#allocation5], %s641
      %645 = dma.smem_to_hbm [#allocation11], 16, %s4, [#allocation5]
    $region45: #{tpu_custom_call.1} parent=1 // pred_fallthru
      _
    // Predicated region
    $region46: #{tpu_custom_call.1} parent=1 // pred_check
      _
    $region47: #{tpu_custom_call.1} parent=1 // pred_check_branch
      %647 = sbr.rel (0) target = $region49
    $region48: #{tpu_custom_call.1} parent=1 // pred_region
      %648 = dma.done [#allocation5], 16
    $region49: #{tpu_custom_call.1} parent=1 // pred_fallthru
      _
    %649 = sfence
    %650 = vsyncpa [#allocation4], 1
    %651 = vsyncpa [#allocation7], 1
    %652 = vsyncpa [#allocation10], 1
    %653 = vsyncpa [#allocation5], 1

</llo_original>
